<compile_context>
chip_gen: v5e
topology: v5e:2x2
jax: 0.10.0
libtpu: 0.0.40
codegen_flags: <defaults>
</compile_context>

<pallas_src>
import math

import jax
import jax.numpy as jnp
from jax.experimental import pallas as pl
from jax.experimental.pallas import tpu as pltpu


# ----------------------------------------------------------------------------
# small helpers
# ----------------------------------------------------------------------------
def _round_up(n, m):
    return ((n + m - 1) // m) * m


def _cdiv(a, b):
    return -(-a // b)


def _pad2d(w, rows, cols, dtype):
    out = jnp.zeros((rows, cols), dtype)
    return out.at[: w.shape[0], : w.shape[1]].set(w.astype(dtype))


def _pad_bias(b, cols, dtype=jnp.float32):
    out = jnp.zeros((1, cols), dtype)
    return out.at[0, : b.shape[0]].set(b.astype(dtype))


# ----------------------------------------------------------------------------
# Fused Pallas kernel: whole MLP forward for one batch tile.
#   refs = (x, emb, W_x, W_emb, b_1, [W_i, b_i]*, out)
# ----------------------------------------------------------------------------
def _make_fused_kernel(n_rest, rest_tanh, compute_dtype):
    def kernel(*refs):
        x_ref, emb_ref, wx_ref, wemb_ref, b1_ref = refs[:5]
        rest = refs[5:5 + 2 * n_rest]
        o_ref = refs[5 + 2 * n_rest]

        f32 = jnp.float32
        # First in_layer on concat([x, emb]) == x @ W_x + emb @ W_emb.
        # Weights are stored in bf16; activations are cast to bf16 at the dot
        # inputs, accumulation stays f32.  tanh operand stays f32.
        h = (jnp.dot(x_ref[...].astype(compute_dtype), wx_ref[...],
                     preferred_element_type=f32)
             + jnp.dot(emb_ref[...].astype(compute_dtype), wemb_ref[...],
                       preferred_element_type=f32)
             + b1_ref[...])
        h = jnp.tanh(h)
        # Remaining in_layers (tanh) and out_layers (tanh except the last).
        for li in range(n_rest):
            w_ref = rest[2 * li]
            b_ref = rest[2 * li + 1]
            h = jnp.dot(h.astype(compute_dtype), w_ref[...],
                        preferred_element_type=f32) + b_ref[...]
            if rest_tanh[li]:
                h = jnp.tanh(h)
        o_ref[...] = h.astype(o_ref.dtype)

    return kernel


# ----------------------------------------------------------------------------
# One-time parameter packing (pad to lane multiples, split W1, cast to bf16).
# Call ONCE; the returned dict is reused across all diffusion steps.
# ----------------------------------------------------------------------------
def prepare_params(params, in_dims, out_dims, emb_size,
                   weight_dtype=jnp.bfloat16):
    assert out_dims[0] == in_dims[-1], "In and out dimensions must equal to each other."
    d_in0 = in_dims[0]
    E_pad = _round_up(emb_size, 128)
    Dx_pad = _round_up(d_in0, 128)

    W1, b1 = params["in_layers"][0]                  # [in0 + emb, h1]
    H1_pad = _round_up(W1.shape[1], 128)
    w_x = _pad2d(W1[:d_in0], Dx_pad, H1_pad, weight_dtype)
    w_emb = _pad2d(W1[d_in0:], E_pad, H1_pad, weight_dtype)
    b1_p = _pad_bias(b1, H1_pad)                     # biases stay f32

    rest_raw = list(params["in_layers"][1:]) + list(params["out_layers"])
    rest_tanh = tuple([True] * (len(params["in_layers"]) - 1)
                      + [True] * (len(params["out_layers"]) - 1)
                      + [False])
    rest_packed = []
    layer_pads = [H1_pad]
    prev_pad = H1_pad
    for (W, b) in rest_raw:
        dpad = _round_up(W.shape[1], 128)
        rest_packed.append(_pad2d(W, prev_pad, dpad, weight_dtype))
        rest_packed.append(_pad_bias(b, dpad))
        prev_pad = dpad
        layer_pads.append(dpad)

    return {
        # tiny emb_layer applied host-side (f32, [emb, emb])
        "W_e": params["emb"][0].astype(jnp.float32),
        "b_e": params["emb"][1].astype(jnp.float32),
        # packed kernel weights (bf16 W, f32 b)
        "weights": [w_x, w_emb, b1_p] + rest_packed,
        "rest_tanh": rest_tanh,
        "n_rest": len(rest_raw),
        "emb_size": emb_size,
        "d_in0": d_in0,
        "d_out": out_dims[-1],
        "E_pad": E_pad,
        "Dx_pad": Dx_pad,
        "Dout_pad": prev_pad,
        "layer_pads": layer_pads,
        "compute_dtype": weight_dtype,
    }


# ----------------------------------------------------------------------------
# Sinusoidal timestep embedding (matches the PyTorch helper, incl. odd dim).
# ----------------------------------------------------------------------------
def timestep_embedding(timesteps, dim, max_period=10000):
    half = dim // 2
    freqs = jnp.exp(
        -math.log(max_period) * jnp.arange(0, half, dtype=jnp.float32) / half)
    args = timesteps[:, None].astype(jnp.float32) * freqs[None]
    embedding = jnp.concatenate([jnp.cos(args), jnp.sin(args)], axis=-1)
    if dim % 2:
        embedding = jnp.concatenate(
            [embedding, jnp.zeros_like(embedding[:, :1])], axis=-1)
    return embedding


# ----------------------------------------------------------------------------
# Forward pass (single fused pallas_call over batch tiles)
# ----------------------------------------------------------------------------
def dnn_forward(packed, x, timesteps, max_period=10000):
    B, d_in0 = x.shape
    assert d_in0 == packed["d_in0"]
    emb_size = packed["emb_size"]
    E_pad, Dx_pad, Dout_pad = packed["E_pad"], packed["Dx_pad"], packed["Dout_pad"]
    d_out = packed["d_out"]
    n_rest = packed["n_rest"]
    rest_tanh = packed["rest_tanh"]
    weights = packed["weights"]
    cdt = packed["compute_dtype"]

    # --- tiny host-side emb_layer on the sinusoidal embedding ---
    te = timestep_embedding(timesteps, emb_size, max_period)
    emb = (jnp.dot(te, packed["W_e"], precision=jax.lax.Precision.HIGHEST)
           + packed["b_e"])

    # --- hardware-aware batch tiling (>=2 grid steps when the batch allows,
    #     smaller tile cap on 64-MiB-VMEM parts such as v7x) ---
    try:
        vmem_phys = int(pltpu.get_tpu_info().vmem_capacity_bytes)
    except Exception:
        vmem_phys = 64 << 20
    tb_cap = 512 if vmem_phys >= (100 << 20) else 256
    tb = max(8, min(tb_cap, _round_up(_cdiv(B, 2), 8)))
    B_pad = _round_up(B, tb)
    grid = (B_pad // tb,)

    # --- pad activations (padded rows / lanes are sliced away at the end) ---
    x_p = jnp.zeros((B_pad, Dx_pad), jnp.float32).at[:B, :d_in0].set(
        x.astype(jnp.float32))
    emb_p = jnp.zeros((B_pad, E_pad), jnp.float32).at[:B, :emb_size].set(emb)

    # --- explicit VMEM budget: weights (resident) + pipelined act tiles ---
    wbytes = sum(int(w.size) * w.dtype.itemsize for w in weights)
    act_in_bytes = 2 * tb * (Dx_pad + E_pad) * 4          # double-buffered f32
    act_out_bytes = 2 * tb * Dout_pad * 4                 # double-buffered f32
    interm = 4 * tb * max(packed["layer_pads"] + [Dx_pad, E_pad]) * 4
    needed = 2 * wbytes + act_in_bytes + act_out_bytes + interm + (2 << 20)
    vmem_limit = int(min(max(needed, 32 << 20), int(vmem_phys * 0.9)))

    def act_spec(d):
        return pl.BlockSpec((tb, d), lambda i: (i, 0))

    def run(single_buffer_weights):
        if single_buffer_weights:
            def wspec(a):
                return pl.BlockSpec(a.shape, lambda i: (0, 0),
                                    pipeline_mode=pl.Buffered(1))
        else:
            def wspec(a):
                return pl.BlockSpec(a.shape, lambda i: (0, 0))

        in_specs = ([act_spec(Dx_pad), act_spec(E_pad)]
                    + [wspec(a) for a in weights])
        out_specs = pl.BlockSpec((tb, Dout_pad), lambda i: (i, 0))

        return pl.pallas_call(
            _make_fused_kernel(n_rest, rest_tanh, cdt),
            out_shape=jax.ShapeDtypeStruct((B_pad, Dout_pad), jnp.float32),
            grid=grid,
            in_specs=in_specs,
            out_specs=out_specs,
            compiler_params=pltpu.CompilerParams(
                dimension_semantics=("parallel",),
                vmem_limit_bytes=vmem_limit),
        )(x_p, emb_p, *weights)

    try:
        out_padded = run(True)
    except Exception:
        # Fallback for toolchains rejecting single-buffered (Buffered(1)) specs.
        out_padded = run(False)

    return out_padded[:B, :d_out]


# ----------------------------------------------------------------------------
# Parameter init (mirrors DNN.init_weights: W ~ N(0, std), b ~ N(0, 0.001)),
# stored as [in, out] (transposed vs. PyTorch's [out, in]).
# ----------------------------------------------------------------------------
def init_linear(key, fan_in, fan_out):
    std = math.sqrt(2.0 / (fan_in + fan_out))
    kw, kb = jax.random.split(key)
    w = jax.random.normal(kw, (fan_in, fan_out), jnp.float32) * std
    b = jax.random.normal(kb, (fan_out,), jnp.float32) * 0.001
    return w, b


def init_dnn_params(key, in_dims, out_dims, emb_size):
    assert out_dims[0] == in_dims[-1], "In and out dimensions must equal to each other."
    keys = jax.random.split(key, 1 + (len(in_dims) - 1) + (len(out_dims) - 1))
    ki = iter(keys)
    params = {}
    params["emb"] = init_linear(next(ki), emb_size, emb_size)
    in_dims_temp = [in_dims[0] + emb_size] + list(in_dims[1:])
    params["in_layers"] = [
        init_linear(next(ki), d_in, d_out)
        for d_in, d_out in zip(in_dims_temp[:-1], in_dims_temp[1:])
    ]
    params["out_layers"] = [
        init_linear(next(ki), d_in, d_out)
        for d_in, d_out in zip(out_dims[:-1], out_dims[1:])
    ]
    return params


# ----------------------------------------------------------------------------
# Pure-JAX f32 reference (matches the PyTorch module, eval mode).
# ----------------------------------------------------------------------------
def dnn_forward_reference(params, x, timesteps, emb_size):
    hp = jax.lax.Precision.HIGHEST
    te = timestep_embedding(timesteps, emb_size)
    W_e, b_e = params["emb"]
    emb = jnp.dot(te, W_e, precision=hp) + b_e
    h = jnp.concatenate([x, emb], axis=-1)
    for W, b in params["in_layers"]:
        h = jnp.tanh(jnp.dot(h, W, precision=hp) + b)
    n = len(params["out_layers"])
    for i, (W, b) in enumerate(params["out_layers"]):
        h = jnp.dot(h, W, precision=hp) + b
        if i != n - 1:
            h = jnp.tanh(h)
    return h


if __name__ == "__main__":
    # Small config consistent with the module:
    #   in_dims=[64, 32], out_dims=[32, 64] (out_dims[0] == in_dims[-1]), emb_size=16
    in_dims = [64, 32]
    out_dims = [32, 64]
    emb_size = 16
    batch = 8

    root = jax.random.PRNGKey(0)
    k_params, k_x, k_t = jax.random.split(root, 3)

    params = init_dnn_params(k_params, in_dims, out_dims, emb_size)
    packed = prepare_params(params, in_dims, out_dims, emb_size)   # one-time packing

    x = jax.random.normal(k_x, (batch, in_dims[0]), jnp.float32)
    timesteps = jax.random.randint(k_t, (batch,), 0, 1000).astype(jnp.float32)

    out = dnn_forward(packed, x, timesteps)
    out = jax.block_until_ready(out)
    assert out.shape == (batch, out_dims[-1]), out.shape

    ref = dnn_forward_reference(params, x, timesteps, emb_size)
    max_err = float(jnp.max(jnp.abs(out - ref)))
    # Tolerance budget reflects bf16 weight storage / bf16 matmul inputs
    # (f32 accumulation) vs. the pure-f32 reference.
    assert jnp.allclose(out, ref, atol=2e-2, rtol=2e-2), f"max_err={max_err}"

    print("KERNEL_OK")
</pallas_src>

<mosaic_0001>
module attributes {stable_mosaic.version = 11 : i64} {
  func.func @kernel(%arg0: i32, %arg1: memref<8x128xf32, #tpu.memory_space<vmem>>, %arg2: memref<8x128xf32, #tpu.memory_space<vmem>>, %arg3: memref<128x128xbf16, #tpu.memory_space<vmem>>, %arg4: memref<128x128xbf16, #tpu.memory_space<vmem>>, %arg5: memref<1x128xf32, #tpu.memory_space<vmem>>, %arg6: memref<128x128xbf16, #tpu.memory_space<vmem>>, %arg7: memref<1x128xf32, #tpu.memory_space<vmem>>, %arg8: memref<8x128xf32, #tpu.memory_space<vmem>>) attributes {dimension_semantics = [#tpu.dimension_semantics<parallel>], iteration_bounds = array<i64: 1>, scalar_prefetch = 0 : i64, scratch_operands = 0 : i64, tpu.core_type = #tpu.core_type<tc>, window_params = [{transform_indices = @transform_0, window_bounds = array<i64: 8, 128>}, {transform_indices = @transform_1, window_bounds = array<i64: 8, 128>}, {pipeline_mode = #tpu.pipeline_mode<synchronous>, transform_indices = @transform_2, window_bounds = array<i64: 128, 128>}, {pipeline_mode = #tpu.pipeline_mode<synchronous>, transform_indices = @transform_3, window_bounds = array<i64: 128, 128>}, {pipeline_mode = #tpu.pipeline_mode<synchronous>, transform_indices = @transform_4, window_bounds = array<i64: 1, 128>}, {pipeline_mode = #tpu.pipeline_mode<synchronous>, transform_indices = @transform_5, window_bounds = array<i64: 128, 128>}, {pipeline_mode = #tpu.pipeline_mode<synchronous>, transform_indices = @transform_6, window_bounds = array<i64: 1, 128>}, {transform_indices = @transform_7, window_bounds = array<i64: 8, 128>}]} {
    %c0 = arith.constant 0 : index
    %c0_0 = arith.constant 0 : index
    %0 = vector.load %arg1[%c0, %c0_0] : memref<8x128xf32, #tpu.memory_space<vmem>>, vector<8x128xf32>
    %1 = arith.truncf %0 : vector<8x128xf32> to vector<8x128xbf16>
    %c0_1 = arith.constant 0 : index
    %c0_2 = arith.constant 0 : index
    %2 = vector.load %arg3[%c0_1, %c0_2] : memref<128x128xbf16, #tpu.memory_space<vmem>>, vector<128x128xbf16>
    %cst = arith.constant dense<0.000000e+00> : vector<8x128xf32>
    %3 = tpu.matmul %1, %2, %cst {dimension_numbers = #tpu.dot_dimension_numbers<[1], [0], [0], [1], [0, 0, 1, 1], [], []>} : vector<8x128xbf16>, vector<128x128xbf16>, vector<8x128xf32> -> vector<8x128xf32>
    %c0_3 = arith.constant 0 : index
    %c0_4 = arith.constant 0 : index
    %4 = vector.load %arg2[%c0_3, %c0_4] : memref<8x128xf32, #tpu.memory_space<vmem>>, vector<8x128xf32>
    %5 = arith.truncf %4 : vector<8x128xf32> to vector<8x128xbf16>
    %c0_5 = arith.constant 0 : index
    %c0_6 = arith.constant 0 : index
    %6 = vector.load %arg4[%c0_5, %c0_6] : memref<128x128xbf16, #tpu.memory_space<vmem>>, vector<128x128xbf16>
    %cst_7 = arith.constant dense<0.000000e+00> : vector<8x128xf32>
    %7 = tpu.matmul %5, %6, %cst_7 {dimension_numbers = #tpu.dot_dimension_numbers<[1], [0], [0], [1], [0, 0, 1, 1], [], []>} : vector<8x128xbf16>, vector<128x128xbf16>, vector<8x128xf32> -> vector<8x128xf32>
    %8 = arith.addf %3, %7 : vector<8x128xf32>
    %c0_8 = arith.constant 0 : index
    %c0_9 = arith.constant 0 : index
    %9 = vector.load %arg5[%c0_8, %c0_9] : memref<1x128xf32, #tpu.memory_space<vmem>>, vector<1x128xf32>
    %10 = vector.broadcast %9 : vector<1x128xf32> to vector<8x128xf32>
    %11 = arith.addf %8, %10 : vector<8x128xf32>
    %12 = math.tanh %11 : vector<8x128xf32>
    %13 = arith.truncf %12 : vector<8x128xf32> to vector<8x128xbf16>
    %c0_10 = arith.constant 0 : index
    %c0_11 = arith.constant 0 : index
    %14 = vector.load %arg6[%c0_10, %c0_11] : memref<128x128xbf16, #tpu.memory_space<vmem>>, vector<128x128xbf16>
    %cst_12 = arith.constant dense<0.000000e+00> : vector<8x128xf32>
    %15 = tpu.matmul %13, %14, %cst_12 {dimension_numbers = #tpu.dot_dimension_numbers<[1], [0], [0], [1], [0, 0, 1, 1], [], []>} : vector<8x128xbf16>, vector<128x128xbf16>, vector<8x128xf32> -> vector<8x128xf32>
    %c0_13 = arith.constant 0 : index
    %c0_14 = arith.constant 0 : index
    %16 = vector.load %arg7[%c0_13, %c0_14] : memref<1x128xf32, #tpu.memory_space<vmem>>, vector<1x128xf32>
    %17 = vector.broadcast %16 : vector<1x128xf32> to vector<8x128xf32>
    %18 = arith.addf %15, %17 : vector<8x128xf32>
    %c0_15 = arith.constant 0 : index
    %c0_16 = arith.constant 0 : index
    %19 = vector.load %arg8[%c0_15, %c0_16] : memref<8x128xf32, #tpu.memory_space<vmem>>, vector<8x128xf32>
    tpu.vector_store %arg8[%c0_15, %c0_16], %18 {strides = array<i32>} : memref<8x128xf32, #tpu.memory_space<vmem>>, vector<8x128xf32>,
    return
  }
  func.func @transform_0(%arg0: i32) -> (i32, i32) {
    %c0_i32 = arith.constant 0 : i32
    %c0_i32_0 = arith.constant 0 : i32
    return %arg0, %c0_i32 : i32, i32
  }
  func.func @transform_1(%arg0: i32) -> (i32, i32) {
    %c0_i32 = arith.constant 0 : i32
    %c0_i32_0 = arith.constant 0 : i32
    return %arg0, %c0_i32 : i32, i32
  }
  func.func @transform_2(%arg0: i32) -> (i32, i32) {
    %c0_i32 = arith.constant 0 : i32
    %c0_i32_0 = arith.constant 0 : i32
    %c0_i32_1 = arith.constant 0 : i32
    return %c0_i32, %c0_i32_0 : i32, i32
  }
  func.func @transform_3(%arg0: i32) -> (i32, i32) {
    %c0_i32 = arith.constant 0 : i32
    %c0_i32_0 = arith.constant 0 : i32
    %c0_i32_1 = arith.constant 0 : i32
    return %c0_i32, %c0_i32_0 : i32, i32
  }
  func.func @transform_4(%arg0: i32) -> (i32, i32) {
    %c0_i32 = arith.constant 0 : i32
    %c0_i32_0 = arith.constant 0 : i32
    %c0_i32_1 = arith.constant 0 : i32
    return %c0_i32, %c0_i32_0 : i32, i32
  }
  func.func @transform_5(%arg0: i32) -> (i32, i32) {
    %c0_i32 = arith.constant 0 : i32
    %c0_i32_0 = arith.constant 0 : i32
    %c0_i32_1 = arith.constant 0 : i32
    return %c0_i32, %c0_i32_0 : i32, i32
  }
  func.func @transform_6(%arg0: i32) -> (i32, i32) {
    %c0_i32 = arith.constant 0 : i32
    %c0_i32_0 = arith.constant 0 : i32
    %c0_i32_1 = arith.constant 0 : i32
    return %c0_i32, %c0_i32_0 : i32, i32
  }
  func.func @transform_7(%arg0: i32) -> (i32, i32) {
    %c0_i32 = arith.constant 0 : i32
    %c0_i32_0 = arith.constant 0 : i32
    return %arg0, %c0_i32 : i32, i32
  }
}

module attributes {stable_mosaic.version = 11 : i64} {
  func.func @kernel(%arg0: i32, %arg1: memref<8x128xf32, #tpu.memory_space<vmem>>, %arg2: memref<8x128xf32, #tpu.memory_space<vmem>>, %arg3: memref<128x128xbf16, #tpu.memory_space<vmem>>, %arg4: memref<128x128xbf16, #tpu.memory_space<vmem>>, %arg5: memref<1x128xf32, #tpu.memory_space<vmem>>, %arg6: memref<128x128xbf16, #tpu.memory_space<vmem>>, %arg7: memref<1x128xf32, #tpu.memory_space<vmem>>, %arg8: memref<8x128xf32, #tpu.memory_space<vmem>>) attributes {dimension_semantics = [#tpu.dimension_semantics<parallel>], iteration_bounds = array<i64: 1>, scalar_prefetch = 0 : i64, scratch_operands = 0 : i64, tpu.core_type = #tpu.core_type<tc>, window_params = [{transform_indices = @transform_0, window_bounds = array<i64: 8, 128>}, {transform_indices = @transform_1, window_bounds = array<i64: 8, 128>}, {pipeline_mode = #tpu.pipeline_mode<synchronous>, transform_indices = @transform_2, window_bounds = array<i64: 128, 128>}, {pipeline_mode = #tpu.pipeline_mode<synchronous>, transform_indices = @transform_3, window_bounds = array<i64: 128, 128>}, {pipeline_mode = #tpu.pipeline_mode<synchronous>, transform_indices = @transform_4, window_bounds = array<i64: 1, 128>}, {pipeline_mode = #tpu.pipeline_mode<synchronous>, transform_indices = @transform_5, window_bounds = array<i64: 128, 128>}, {pipeline_mode = #tpu.pipeline_mode<synchronous>, transform_indices = @transform_6, window_bounds = array<i64: 1, 128>}, {transform_indices = @transform_7, window_bounds = array<i64: 8, 128>}]} {
    %c0 = arith.constant 0 : index
    %c0_0 = arith.constant 0 : index
    %0 = vector.load %arg1[%c0, %c0_0] : memref<8x128xf32, #tpu.memory_space<vmem>>, vector<8x128xf32>
    %1 = arith.truncf %0 : vector<8x128xf32> to vector<8x128xbf16>
    %c0_1 = arith.constant 0 : index
    %c0_2 = arith.constant 0 : index
    %2 = vector.load %arg3[%c0_1, %c0_2] : memref<128x128xbf16, #tpu.memory_space<vmem>>, vector<128x128xbf16>
    %cst = arith.constant dense<0.000000e+00> : vector<8x128xf32>
    %3 = tpu.matmul %1, %2, %cst {dimension_numbers = #tpu.dot_dimension_numbers<[1], [0], [0], [1], [0, 0, 1, 1], [], []>} : vector<8x128xbf16>, vector<128x128xbf16>, vector<8x128xf32> -> vector<8x128xf32>
    %c0_3 = arith.constant 0 : index
    %c0_4 = arith.constant 0 : index
    %4 = vector.load %arg2[%c0_3, %c0_4] : memref<8x128xf32, #tpu.memory_space<vmem>>, vector<8x128xf32>
    %5 = arith.truncf %4 : vector<8x128xf32> to vector<8x128xbf16>
    %c0_5 = arith.constant 0 : index
    %c0_6 = arith.constant 0 : index
    %6 = vector.load %arg4[%c0_5, %c0_6] : memref<128x128xbf16, #tpu.memory_space<vmem>>, vector<128x128xbf16>
    %cst_7 = arith.constant dense<0.000000e+00> : vector<8x128xf32>
    %7 = tpu.matmul %5, %6, %cst_7 {dimension_numbers = #tpu.dot_dimension_numbers<[1], [0], [0], [1], [0, 0, 1, 1], [], []>} : vector<8x128xbf16>, vector<128x128xbf16>, vector<8x128xf32> -> vector<8x128xf32>
    %8 = arith.addf %3, %7 : vector<8x128xf32>
    %c0_8 = arith.constant 0 : index
    %c0_9 = arith.constant 0 : index
    %9 = vector.load %arg5[%c0_8, %c0_9] : memref<1x128xf32, #tpu.memory_space<vmem>>, vector<1x128xf32>
    %10 = vector.broadcast %9 : vector<1x128xf32> to vector<8x128xf32>
    %11 = arith.addf %8, %10 : vector<8x128xf32>
    %12 = math.tanh %11 : vector<8x128xf32>
    %13 = arith.truncf %12 : vector<8x128xf32> to vector<8x128xbf16>
    %c0_10 = arith.constant 0 : index
    %c0_11 = arith.constant 0 : index
    %14 = vector.load %arg6[%c0_10, %c0_11] : memref<128x128xbf16, #tpu.memory_space<vmem>>, vector<128x128xbf16>
    %cst_12 = arith.constant dense<0.000000e+00> : vector<8x128xf32>
    %15 = tpu.matmul %13, %14, %cst_12 {dimension_numbers = #tpu.dot_dimension_numbers<[1], [0], [0], [1], [0, 0, 1, 1], [], []>} : vector<8x128xbf16>, vector<128x128xbf16>, vector<8x128xf32> -> vector<8x128xf32>
    %c0_13 = arith.constant 0 : index
    %c0_14 = arith.constant 0 : index
    %16 = vector.load %arg7[%c0_13, %c0_14] : memref<1x128xf32, #tpu.memory_space<vmem>>, vector<1x128xf32>
    %17 = vector.broadcast %16 : vector<1x128xf32> to vector<8x128xf32>
    %18 = arith.addf %15, %17 : vector<8x128xf32>
    %c0_15 = arith.constant 0 : index
    %c0_16 = arith.constant 0 : index
    %19 = vector.load %arg8[%c0_15, %c0_16] : memref<8x128xf32, #tpu.memory_space<vmem>>, vector<8x128xf32>
    tpu.vector_store %arg8[%c0_15, %c0_16], %18 {strides = array<i32>} : memref<8x128xf32, #tpu.memory_space<vmem>>, vector<8x128xf32>,
    return
  }
  func.func @transform_0(%arg0: i32) -> (i32, i32) {
    %c0_i32 = arith.constant 0 : i32
    %c0_i32_0 = arith.constant 0 : i32
    return %arg0, %c0_i32 : i32, i32
  }
  func.func @transform_1(%arg0: i32) -> (i32, i32) {
    %c0_i32 = arith.constant 0 : i32
    %c0_i32_0 = arith.constant 0 : i32
    return %arg0, %c0_i32 : i32, i32
  }
  func.func @transform_2(%arg0: i32) -> (i32, i32) {
    %c0_i32 = arith.constant 0 : i32
    %c0_i32_0 = arith.constant 0 : i32
    %c0_i32_1 = arith.constant 0 : i32
    return %c0_i32, %c0_i32_0 : i32, i32
  }
  func.func @transform_3(%arg0: i32) -> (i32, i32) {
    %c0_i32 = arith.constant 0 : i32
    %c0_i32_0 = arith.constant 0 : i32
    %c0_i32_1 = arith.constant 0 : i32
    return %c0_i32, %c0_i32_0 : i32, i32
  }
  func.func @transform_4(%arg0: i32) -> (i32, i32) {
    %c0_i32 = arith.constant 0 : i32
    %c0_i32_0 = arith.constant 0 : i32
    %c0_i32_1 = arith.constant 0 : i32
    return %c0_i32, %c0_i32_0 : i32, i32
  }
  func.func @transform_5(%arg0: i32) -> (i32, i32) {
    %c0_i32 = arith.constant 0 : i32
    %c0_i32_0 = arith.constant 0 : i32
    %c0_i32_1 = arith.constant 0 : i32
    return %c0_i32, %c0_i32_0 : i32, i32
  }
  func.func @transform_6(%arg0: i32) -> (i32, i32) {
    %c0_i32 = arith.constant 0 : i32
    %c0_i32_0 = arith.constant 0 : i32
    %c0_i32_1 = arith.constant 0 : i32
    return %c0_i32, %c0_i32_0 : i32, i32
  }
  func.func @transform_7(%arg0: i32) -> (i32, i32) {
    %c0_i32 = arith.constant 0 : i32
    %c0_i32_0 = arith.constant 0 : i32
    return %arg0, %c0_i32 : i32, i32
  }
}

</mosaic_0001>

<llo_original>
// kernel: tpu_custom_call.1
$region0: #{tpu_custom_call.1}
  #allocation0 [shape = 'u32[]', space=smem, size = 0x4, offset = 0x4, fixed_abs, tag = 'smem constant byte address 0x4 - core index']
  #allocation1 [shape = 'u32[72,128]{1,0:T(1,128)}', space=vmem, size = 0x9000, scoped, tag = 'internal scratch']
  %s0 = inlined_call_operand.hbm [shape: f32[8,128], index: 0, kind: input, shape index: {}]
  %s1 = inlined_call_operand.hbm [shape: f32[8,128], index: 1, kind: input, shape index: {}]
  %s2 = inlined_call_operand.hbm [shape: bf16[128,128], index: 2, kind: input, shape index: {}]
  %s3 = inlined_call_operand.hbm [shape: bf16[128,128], index: 3, kind: input, shape index: {}]
  %s4 = inlined_call_operand.vmem [shape: f32[1,128], index: 4, kind: input, shape index: {}]
  %s5 = inlined_call_operand.hbm [shape: bf16[128,128], index: 5, kind: input, shape index: {}]
  %s6 = inlined_call_operand.vmem [shape: f32[1,128], index: 6, kind: input, shape index: {}]
  %s7 = inlined_call_operand.hbm [shape: f32[8,128], index: 7, kind: output, shape index: {}]
  %s8 = sld [smem:[#allocation0]]
  $region58: #{tpu_custom_call.1} parent=0
    _
  %s10 = ssub.s32 1, %s8
  %s11 = scalar_select 0, %s10, %s8
  $region1: #{tpu_custom_call.1} parent=0
    #allocation2 [shape = 'u8[4096]{0}', space=vmem, size = 0x1000, scoped, tag = 'input window, operand 0, single buffered']
    #allocation3 [shape = 's32[1]{0}', space=sflag, size = 0x4, scoped, tag = 'scoped memory for tpu_custom_call.1']
    #allocation4 [shape = 's32[1]{0}', space=sflag, size = 0x4, scoped, tag = 'scoped memory for tpu_custom_call.1']
    #allocation5 [shape = 'u8[4096]{0}', space=vmem, size = 0x1000, scoped, tag = 'input window, operand 1, single buffered']
    #allocation6 [shape = 's32[1]{0}', space=sflag, size = 0x4, scoped, tag = 'scoped memory for tpu_custom_call.1']
    #allocation7 [shape = 'u8[32768]{0}', space=vmem, size = 0x8000, scoped, tag = 'input window, operand 2, single buffered']
    #allocation8 [shape = 'u8[32768]{0}', space=vmem, size = 0x8000, scoped, tag = 'input window, operand 3, single buffered']
    #allocation9 [shape = 's32[1]{0}', space=sflag, size = 0x4, scoped, tag = 'scoped memory for tpu_custom_call.1']
    #allocation10 [shape = 'u8[32768]{0}', space=vmem, size = 0x8000, scoped, tag = 'input window, operand 5, single buffered']
    #allocation11 [shape = 'u8[4096]{0}', space=vmem, size = 0x1000, scoped, tag = 'output window, operand 0, single buffered']
    %12 = vsyncpa [#allocation3], 0
    %13 = vsyncpa [#allocation6], 0
    %14 = vsyncpa [#allocation9], 0
    %15 = vsyncpa [#allocation4], 0
    // Predicated region
    $region2: #{tpu_custom_call.1} parent=1 // pred_check
      _
    $region3: #{tpu_custom_call.1} parent=1 // pred_check_branch
      %17 = sbr.rel (0) target = $region5
    $region4: #{tpu_custom_call.1} parent=1 // pred_region
      %19 = vsyncadd [#allocation3], 0
      %s21 = sshll.u32 %s0, 4
      %s22 = int_to_ptr.hbm [resolvable:$true] %s21
      %s23 = sshll.u32 [#allocation2], 4
      %s24 = int_to_ptr.vmem [resolvable:$true] %s23
      %26 = dma.hbm_to_vmem [thread:$0]  %s22, 128, %s24, [#allocation3]
    $region5: #{tpu_custom_call.1} parent=1 // pred_fallthru
      _
    // Predicated region
    $region6: #{tpu_custom_call.1} parent=1 // pred_check
      _
    $region7: #{tpu_custom_call.1} parent=1 // pred_check_branch
      %28 = sbr.rel (0) target = $region9
    $region8: #{tpu_custom_call.1} parent=1 // pred_region
      %30 = vsyncadd [#allocation6], 0
      %s32 = sshll.u32 %s1, 4
      %s33 = int_to_ptr.hbm [resolvable:$true] %s32
      %s34 = sshll.u32 [#allocation5], 4
      %s35 = int_to_ptr.vmem [resolvable:$true] %s34
      %37 = dma.hbm_to_vmem [thread:$0]  %s33, 128, %s35, [#allocation6]
    $region9: #{tpu_custom_call.1} parent=1 // pred_fallthru
      _
    // Predicated region
    $region10: #{tpu_custom_call.1} parent=1 // pred_check
      _
    $region11: #{tpu_custom_call.1} parent=1 // pred_check_branch
      %39 = sbr.rel (0) target = $region13
    $region12: #{tpu_custom_call.1} parent=1 // pred_region
      %41 = vsyncadd [#allocation6], 0
      %s42 = sshll.u32 %s2, 4
      %s43 = int_to_ptr.hbm [resolvable:$true] %s42
      %s44 = sshll.u32 [#allocation7], 4
      %s45 = int_to_ptr.vmem [resolvable:$true] %s44
      %50 = dma.hbm_to_vmem [thread:$0]  %s43, 1024, %s45, [#allocation6], 64, 64, 4
    $region13: #{tpu_custom_call.1} parent=1 // pred_fallthru
      _
    // Predicated region
    $region14: #{tpu_custom_call.1} parent=1 // pred_check
      _
    $region15: #{tpu_custom_call.1} parent=1 // pred_check_branch
      %52 = sbr.rel (0) target = $region17
    $region16: #{tpu_custom_call.1} parent=1 // pred_region
      %54 = vsyncadd [#allocation9], 0
      %s55 = sshll.u32 %s3, 4
      %s56 = int_to_ptr.hbm [resolvable:$true] %s55
      %s57 = sshll.u32 [#allocation8], 4
      %s58 = int_to_ptr.vmem [resolvable:$true] %s57
      %63 = dma.hbm_to_vmem [thread:$0]  %s56, 1024, %s58, [#allocation9], 64, 64, 4
    $region17: #{tpu_custom_call.1} parent=1 // pred_fallthru
      _
    // Predicated region
    $region18: #{tpu_custom_call.1} parent=1 // pred_check
      _
    $region19: #{tpu_custom_call.1} parent=1 // pred_check_branch
      %65 = sbr.rel (0) target = $region21
    $region20: #{tpu_custom_call.1} parent=1 // pred_region
      _
    $region21: #{tpu_custom_call.1} parent=1 // pred_fallthru
      _
    // Predicated region
    $region22: #{tpu_custom_call.1} parent=1 // pred_check
      _
    $region23: #{tpu_custom_call.1} parent=1 // pred_check_branch
      %67 = sbr.rel (0) target = $region25
    $region24: #{tpu_custom_call.1} parent=1 // pred_region
      %69 = vsyncadd [#allocation9], 0
      %s70 = sshll.u32 %s5, 4
      %s71 = int_to_ptr.hbm [resolvable:$true] %s70
      %s72 = sshll.u32 [#allocation10], 4
      %s73 = int_to_ptr.vmem [resolvable:$true] %s72
      %78 = dma.hbm_to_vmem [thread:$0]  %s71, 1024, %s73, [#allocation9], 64, 64, 4
    $region25: #{tpu_custom_call.1} parent=1 // pred_fallthru
      _
    // Predicated region
    $region26: #{tpu_custom_call.1} parent=1 // pred_check
      _
    $region27: #{tpu_custom_call.1} parent=1 // pred_check_branch
      %80 = sbr.rel (0) target = $region29
    $region28: #{tpu_custom_call.1} parent=1 // pred_region
      _
    $region29: #{tpu_custom_call.1} parent=1 // pred_fallthru
      _
    // Predicated region
    $region30: #{tpu_custom_call.1} parent=1 // pred_check
      _
    $region31: #{tpu_custom_call.1} parent=1 // pred_check_branch
      %82 = sbr.rel (0) target = $region33
    $region32: #{tpu_custom_call.1} parent=1 // pred_region
      %84 = dma.done [#allocation3], 128
    $region33: #{tpu_custom_call.1} parent=1 // pred_fallthru
      _
    // Predicated region
    $region34: #{tpu_custom_call.1} parent=1 // pred_check
      _
    $region35: #{tpu_custom_call.1} parent=1 // pred_check_branch
      %86 = sbr.rel (0) target = $region37
    $region36: #{tpu_custom_call.1} parent=1 // pred_region
      %88 = dma.done [#allocation6], 128
    $region37: #{tpu_custom_call.1} parent=1 // pred_fallthru
      _
    // Predicated region
    $region38: #{tpu_custom_call.1} parent=1 // pred_check
      _
    $region39: #{tpu_custom_call.1} parent=1 // pred_check_branch
      %90 = sbr.rel (0) target = $region41
    $region40: #{tpu_custom_call.1} parent=1 // pred_region
      %92 = dma.done [#allocation6], 1024
    $region41: #{tpu_custom_call.1} parent=1 // pred_fallthru
      _
    // Predicated region
    $region42: #{tpu_custom_call.1} parent=1 // pred_check
      _
    $region43: #{tpu_custom_call.1} parent=1 // pred_check_branch
      %94 = sbr.rel (0) target = $region45
    $region44: #{tpu_custom_call.1} parent=1 // pred_region
      %96 = dma.done [#allocation9], 1024
    $region45: #{tpu_custom_call.1} parent=1 // pred_fallthru
      _
    // Predicated region
    $region46: #{tpu_custom_call.1} parent=1 // pred_check
      _
    $region47: #{tpu_custom_call.1} parent=1 // pred_check_branch
      %98 = sbr.rel (0) target = $region49
    $region48: #{tpu_custom_call.1} parent=1 // pred_region
      %100 = dma.done [#allocation9], 1024
    $region49: #{tpu_custom_call.1} parent=1 // pred_fallthru
      _
    %v101 = vld [vmem:[#allocation2] sm:$0xff]
    %v102 = vpack.c.bf16 %v101, %v101
    %v103 = vld [vmem:[#allocation7] sm:$0xf]
    %v104 = vld [vmem:[#allocation7 + $0x4] sm:$0xf]
    %v105 = vld [vmem:[#allocation7 + $0x8] sm:$0xf]
    %v106 = vld [vmem:[#allocation7 + $0xc] sm:$0xf]
    %v107 = vld [vmem:[#allocation7 + $0x10] sm:$0xf]
    %v108 = vld [vmem:[#allocation7 + $0x14] sm:$0xf]
    %v109 = vld [vmem:[#allocation7 + $0x18] sm:$0xf]
    %v110 = vld [vmem:[#allocation7 + $0x1c] sm:$0xf]
    %v111 = vld [vmem:[#allocation7 + $0x20] sm:$0xf]
    %v112 = vld [vmem:[#allocation7 + $0x24] sm:$0xf]
    %v113 = vld [vmem:[#allocation7 + $0x28] sm:$0xf]
    %v114 = vld [vmem:[#allocation7 + $0x2c] sm:$0xf]
    %v115 = vld [vmem:[#allocation7 + $0x30] sm:$0xf]
    %v116 = vld [vmem:[#allocation7 + $0x34] sm:$0xf]
    %v117 = vld [vmem:[#allocation7 + $0x38] sm:$0xf]
    %v118 = vld [vmem:[#allocation7 + $0x3c] sm:$0xf]
    %v119 = vld [vmem:[#allocation5] sm:$0xff]
    %v120 = vpack.c.bf16 %v119, %v119
    %v121 = vld [vmem:[#allocation8] sm:$0xf]
    %v122 = vld [vmem:[#allocation8 + $0x4] sm:$0xf]
    %v123 = vld [vmem:[#allocation8 + $0x8] sm:$0xf]
    %v124 = vld [vmem:[#allocation8 + $0xc] sm:$0xf]
    %v125 = vld [vmem:[#allocation8 + $0x10] sm:$0xf]
    %v126 = vld [vmem:[#allocation8 + $0x14] sm:$0xf]
    %v127 = vld [vmem:[#allocation8 + $0x18] sm:$0xf]
    %v128 = vld [vmem:[#allocation8 + $0x1c] sm:$0xf]
    %v129 = vld [vmem:[#allocation8 + $0x20] sm:$0xf]
    %v130 = vld [vmem:[#allocation8 + $0x24] sm:$0xf]
    %v131 = vld [vmem:[#allocation8 + $0x28] sm:$0xf]
    %v132 = vld [vmem:[#allocation8 + $0x2c] sm:$0xf]
    %v133 = vld [vmem:[#allocation8 + $0x30] sm:$0xf]
    %v134 = vld [vmem:[#allocation8 + $0x34] sm:$0xf]
    %v135 = vld [vmem:[#allocation8 + $0x38] sm:$0xf]
    %v136 = vld [vmem:[#allocation8 + $0x3c] sm:$0xf]
    %v153 = vunpack.c.l.b16 %v121
    %v154 = vunpack.c.l.b16 %v122
    %v155 = vunpack.c.l.b16 %v123
    %v156 = vunpack.c.l.b16 %v124
    %v157 = vunpack.c.l.b16 %v125
    %v158 = vunpack.c.l.b16 %v126
    %v159 = vunpack.c.l.b16 %v127
    %v160 = vunpack.c.l.b16 %v128
    %v161 = vunpack.c.l.b16 %v129
    %v162 = vunpack.c.l.b16 %v130
    %v163 = vunpack.c.l.b16 %v131
    %v164 = vunpack.c.l.b16 %v132
    %v165 = vunpack.c.l.b16 %v133
    %v166 = vunpack.c.l.b16 %v134
    %v167 = vunpack.c.l.b16 %v135
    %v168 = vunpack.c.l.b16 %v136
    %v169 = vpack.c.b16 %v154, %v153
    %v170 = vpack.c.b16 %v156, %v155
    %v171 = vpack.c.b16 %v158, %v157
    %v172 = vpack.c.b16 %v160, %v159
    %v173 = vpack.c.b16 %v162, %v161
    %v174 = vpack.c.b16 %v164, %v163
    %v175 = vpack.c.b16 %v166, %v165
    %v176 = vpack.c.b16 %v168, %v167
    %185 = vmatpush.bf16.msra.mxu0 %v176
    %186 = vmatpush.bf16.msra.mxu0 %v175
    %187 = vmatpush.bf16.msra.mxu0 %v174
    %188 = vmatpush.bf16.msra.mxu0 %v173
    %189 = vmatpush.bf16.msra.mxu0 %v172
    %190 = vmatpush.bf16.msra.mxu0 %v171
    %191 = vmatpush.bf16.msra.mxu0 %v170
    %192 = vmatpush.bf16.msra.mxu0 %v169
    %193 = vmatmul.bf16.gmra.mxu0 %v120
    %v194 = vpop.f32.mrf.mxu0
    %v195 = vadd.f32 0.0, %v194
    %v196 = vpop.f32.mrf.mxu0
    %197 = vdwg.mxu0
    %v214 = vunpack.c.l.b16 %v103
    %v215 = vunpack.c.l.b16 %v104
    %v216 = vunpack.c.l.b16 %v105
    %v217 = vunpack.c.l.b16 %v106
    %v218 = vunpack.c.l.b16 %v107
    %v219 = vunpack.c.l.b16 %v108
    %v220 = vunpack.c.l.b16 %v109
    %v221 = vunpack.c.l.b16 %v110
    %v222 = vunpack.c.l.b16 %v111
    %v223 = vunpack.c.l.b16 %v112
    %v224 = vunpack.c.l.b16 %v113
    %v225 = vunpack.c.l.b16 %v114
    %v226 = vunpack.c.l.b16 %v115
    %v227 = vunpack.c.l.b16 %v116
    %v228 = vunpack.c.l.b16 %v117
    %v229 = vunpack.c.l.b16 %v118
    %v230 = vpack.c.b16 %v215, %v214
    %v231 = vpack.c.b16 %v217, %v216
    %v232 = vpack.c.b16 %v219, %v218
    %v233 = vpack.c.b16 %v221, %v220
    %v234 = vpack.c.b16 %v223, %v222
    %v235 = vpack.c.b16 %v225, %v224
    %v236 = vpack.c.b16 %v227, %v226
    %v237 = vpack.c.b16 %v229, %v228
    %246 = vmatpush.bf16.msra.mxu0 %v237
    %247 = vmatpush.bf16.msra.mxu0 %v236
    %248 = vmatpush.bf16.msra.mxu0 %v235
    %249 = vmatpush.bf16.msra.mxu0 %v234
    %250 = vmatpush.bf16.msra.mxu0 %v233
    %251 = vmatpush.bf16.msra.mxu0 %v232
    %252 = vmatpush.bf16.msra.mxu0 %v231
    %253 = vmatpush.bf16.msra.mxu0 %v230
    %254 = vmatmul.bf16.gmra.mxu0 %v102
    %v255 = vpop.f32.mrf.mxu0
    %v256 = vadd.f32 %v195, %v255
    %v257 = vpop.f32.mrf.mxu0
    %258 = vdwg.mxu0
    %v259 = vld [vmem:[%s4] sm:$0x1]
    %v261 = vperm.slane %v259, 0
    %v263 = vadd.f32 %v256, %v261
    %v264 = vtanh.pop %v263
    %v265 = vpack.c.bf16 %v264, %v264
    %v266 = vld [vmem:[#allocation10] sm:$0xf]
    %v267 = vld [vmem:[#allocation10 + $0x4] sm:$0xf]
    %v268 = vld [vmem:[#allocation10 + $0x8] sm:$0xf]
    %v269 = vld [vmem:[#allocation10 + $0xc] sm:$0xf]
    %v270 = vld [vmem:[#allocation10 + $0x10] sm:$0xf]
    %v271 = vld [vmem:[#allocation10 + $0x14] sm:$0xf]
    %v272 = vld [vmem:[#allocation10 + $0x18] sm:$0xf]
    %v273 = vld [vmem:[#allocation10 + $0x1c] sm:$0xf]
    %v274 = vld [vmem:[#allocation10 + $0x20] sm:$0xf]
    %v275 = vld [vmem:[#allocation10 + $0x24] sm:$0xf]
    %v276 = vld [vmem:[#allocation10 + $0x28] sm:$0xf]
    %v277 = vld [vmem:[#allocation10 + $0x2c] sm:$0xf]
    %v278 = vld [vmem:[#allocation10 + $0x30] sm:$0xf]
    %v279 = vld [vmem:[#allocation10 + $0x34] sm:$0xf]
    %v280 = vld [vmem:[#allocation10 + $0x38] sm:$0xf]
    %v281 = vld [vmem:[#allocation10 + $0x3c] sm:$0xf]
    %v282 = vld [vmem:[%s6] sm:$0x1]
    %v284 = vperm.slane %v282, 0
    %v302 = vunpack.c.l.b16 %v266
    %v303 = vunpack.c.l.b16 %v267
    %v304 = vunpack.c.l.b16 %v268
    %v305 = vunpack.c.l.b16 %v269
    %v306 = vunpack.c.l.b16 %v270
    %v307 = vunpack.c.l.b16 %v271
    %v308 = vunpack.c.l.b16 %v272
    %v309 = vunpack.c.l.b16 %v273
    %v310 = vunpack.c.l.b16 %v274
    %v311 = vunpack.c.l.b16 %v275
    %v312 = vunpack.c.l.b16 %v276
    %v313 = vunpack.c.l.b16 %v277
    %v314 = vunpack.c.l.b16 %v278
    %v315 = vunpack.c.l.b16 %v279
    %v316 = vunpack.c.l.b16 %v280
    %v317 = vunpack.c.l.b16 %v281
    %v318 = vpack.c.b16 %v303, %v302
    %v319 = vpack.c.b16 %v305, %v304
    %v320 = vpack.c.b16 %v307, %v306
    %v321 = vpack.c.b16 %v309, %v308
    %v322 = vpack.c.b16 %v311, %v310
    %v323 = vpack.c.b16 %v313, %v312
    %v324 = vpack.c.b16 %v315, %v314
    %v325 = vpack.c.b16 %v317, %v316
    %334 = vmatpush.bf16.msra.mxu0 %v325
    %335 = vmatpush.bf16.msra.mxu0 %v324
    %336 = vmatpush.bf16.msra.mxu0 %v323
    %337 = vmatpush.bf16.msra.mxu0 %v322
    %338 = vmatpush.bf16.msra.mxu0 %v321
    %339 = vmatpush.bf16.msra.mxu0 %v320
    %340 = vmatpush.bf16.msra.mxu0 %v319
    %341 = vmatpush.bf16.msra.mxu0 %v318
    %342 = vmatmul.bf16.gmra.mxu0 %v265
    %v343 = vpop.f32.mrf.mxu0
    %v344 = vadd.f32 %v284, %v343
    %v345 = vpop.f32.mrf.mxu0
    %346 = vdwg.mxu0
    %347 = vst [vmem:[#allocation11] sm:$0xff] %v344
    // Predicated region
    $region50: #{tpu_custom_call.1} parent=1 // pred_check
      _
    $region51: #{tpu_custom_call.1} parent=1 // pred_check_branch
      %349 = sbr.rel (0) target = $region53
    $region52: #{tpu_custom_call.1} parent=1 // pred_region
      %351 = vsyncadd [#allocation4], 0
      %s353 = sshll.u32 [#allocation11], 4
      %s354 = int_to_ptr.vmem [resolvable:$true] %s353
      %s355 = sshll.u32 %s7, 4
      %s356 = int_to_ptr.hbm [resolvable:$true] %s355
      %358 = dma.vmem_to_hbm [thread:$0]  %s354, 128, %s356, [#allocation4]
    $region53: #{tpu_custom_call.1} parent=1 // pred_fallthru
      _
    // Predicated region
    $region54: #{tpu_custom_call.1} parent=1 // pred_check
      _
    $region55: #{tpu_custom_call.1} parent=1 // pred_check_branch
      %360 = sbr.rel (0) target = $region57
    $region56: #{tpu_custom_call.1} parent=1 // pred_region
      %362 = dma.done [#allocation4], 128
    $region57: #{tpu_custom_call.1} parent=1 // pred_fallthru
      _
    %363 = vsyncpa [#allocation3], 1
    %364 = vsyncpa [#allocation6], 1
    %365 = vsyncpa [#allocation9], 1
    %366 = vsyncpa [#allocation4], 1

// kernel: tpu_custom_call.1
$region0: #{tpu_custom_call.1}
  #allocation0 [shape = 'u32[]', space=smem, size = 0x4, offset = 0x4, fixed_abs, tag = 'smem constant byte address 0x4 - core index']
  #allocation1 [shape = 'u32[72,128]{1,0:T(1,128)}', space=vmem, size = 0x9000, scoped, tag = 'internal scratch']
  %s0 = inlined_call_operand.hbm [shape: f32[8,128], index: 0, kind: input, shape index: {}]
  %s1 = inlined_call_operand.hbm [shape: f32[8,128], index: 1, kind: input, shape index: {}]
  %s2 = inlined_call_operand.hbm [shape: bf16[128,128], index: 2, kind: input, shape index: {}]
  %s3 = inlined_call_operand.hbm [shape: bf16[128,128], index: 3, kind: input, shape index: {}]
  %s4 = inlined_call_operand.vmem [shape: f32[1,128], index: 4, kind: input, shape index: {}]
  %s5 = inlined_call_operand.hbm [shape: bf16[128,128], index: 5, kind: input, shape index: {}]
  %s6 = inlined_call_operand.vmem [shape: f32[1,128], index: 6, kind: input, shape index: {}]
  %s7 = inlined_call_operand.hbm [shape: f32[8,128], index: 7, kind: output, shape index: {}]
  %s8 = sld [smem:[#allocation0]]
  $region58: #{tpu_custom_call.1} parent=0
    _
  %s10 = ssub.s32 1, %s8
  %s11 = scalar_select 0, %s10, %s8
  $region1: #{tpu_custom_call.1} parent=0
    #allocation2 [shape = 'u8[4096]{0}', space=vmem, size = 0x1000, scoped, tag = 'input window, operand 0, single buffered']
    #allocation3 [shape = 's32[1]{0}', space=sflag, size = 0x4, scoped, tag = 'scoped memory for tpu_custom_call.1']
    #allocation4 [shape = 's32[1]{0}', space=sflag, size = 0x4, scoped, tag = 'scoped memory for tpu_custom_call.1']
    #allocation5 [shape = 'u8[4096]{0}', space=vmem, size = 0x1000, scoped, tag = 'input window, operand 1, single buffered']
    #allocation6 [shape = 's32[1]{0}', space=sflag, size = 0x4, scoped, tag = 'scoped memory for tpu_custom_call.1']
    #allocation7 [shape = 'u8[32768]{0}', space=vmem, size = 0x8000, scoped, tag = 'input window, operand 2, single buffered']
    #allocation8 [shape = 'u8[32768]{0}', space=vmem, size = 0x8000, scoped, tag = 'input window, operand 3, single buffered']
    #allocation9 [shape = 's32[1]{0}', space=sflag, size = 0x4, scoped, tag = 'scoped memory for tpu_custom_call.1']
    #allocation10 [shape = 'u8[32768]{0}', space=vmem, size = 0x8000, scoped, tag = 'input window, operand 5, single buffered']
    #allocation11 [shape = 'u8[4096]{0}', space=vmem, size = 0x1000, scoped, tag = 'output window, operand 0, single buffered']
    %12 = vsyncpa [#allocation3], 0
    %13 = vsyncpa [#allocation6], 0
    %14 = vsyncpa [#allocation9], 0
    %15 = vsyncpa [#allocation4], 0
    // Predicated region
    $region2: #{tpu_custom_call.1} parent=1 // pred_check
      _
    $region3: #{tpu_custom_call.1} parent=1 // pred_check_branch
      %17 = sbr.rel (0) target = $region5
    $region4: #{tpu_custom_call.1} parent=1 // pred_region
      %19 = vsyncadd [#allocation3], 0
      %s21 = sshll.u32 %s0, 4
      %s22 = int_to_ptr.hbm [resolvable:$true] %s21
      %s23 = sshll.u32 [#allocation2], 4
      %s24 = int_to_ptr.vmem [resolvable:$true] %s23
      %26 = dma.hbm_to_vmem [thread:$0]  %s22, 128, %s24, [#allocation3]
    $region5: #{tpu_custom_call.1} parent=1 // pred_fallthru
      _
    // Predicated region
    $region6: #{tpu_custom_call.1} parent=1 // pred_check
      _
    $region7: #{tpu_custom_call.1} parent=1 // pred_check_branch
      %28 = sbr.rel (0) target = $region9
    $region8: #{tpu_custom_call.1} parent=1 // pred_region
      %30 = vsyncadd [#allocation6], 0
      %s32 = sshll.u32 %s1, 4
      %s33 = int_to_ptr.hbm [resolvable:$true] %s32
      %s34 = sshll.u32 [#allocation5], 4
      %s35 = int_to_ptr.vmem [resolvable:$true] %s34
      %37 = dma.hbm_to_vmem [thread:$0]  %s33, 128, %s35, [#allocation6]
    $region9: #{tpu_custom_call.1} parent=1 // pred_fallthru
      _
    // Predicated region
    $region10: #{tpu_custom_call.1} parent=1 // pred_check
      _
    $region11: #{tpu_custom_call.1} parent=1 // pred_check_branch
      %39 = sbr.rel (0) target = $region13
    $region12: #{tpu_custom_call.1} parent=1 // pred_region
      %41 = vsyncadd [#allocation6], 0
      %s42 = sshll.u32 %s2, 4
      %s43 = int_to_ptr.hbm [resolvable:$true] %s42
      %s44 = sshll.u32 [#allocation7], 4
      %s45 = int_to_ptr.vmem [resolvable:$true] %s44
      %50 = dma.hbm_to_vmem [thread:$0]  %s43, 1024, %s45, [#allocation6], 64, 64, 4
    $region13: #{tpu_custom_call.1} parent=1 // pred_fallthru
      _
    // Predicated region
    $region14: #{tpu_custom_call.1} parent=1 // pred_check
      _
    $region15: #{tpu_custom_call.1} parent=1 // pred_check_branch
      %52 = sbr.rel (0) target = $region17
    $region16: #{tpu_custom_call.1} parent=1 // pred_region
      %54 = vsyncadd [#allocation9], 0
      %s55 = sshll.u32 %s3, 4
      %s56 = int_to_ptr.hbm [resolvable:$true] %s55
      %s57 = sshll.u32 [#allocation8], 4
      %s58 = int_to_ptr.vmem [resolvable:$true] %s57
      %63 = dma.hbm_to_vmem [thread:$0]  %s56, 1024, %s58, [#allocation9], 64, 64, 4
    $region17: #{tpu_custom_call.1} parent=1 // pred_fallthru
      _
    // Predicated region
    $region18: #{tpu_custom_call.1} parent=1 // pred_check
      _
    $region19: #{tpu_custom_call.1} parent=1 // pred_check_branch
      %65 = sbr.rel (0) target = $region21
    $region20: #{tpu_custom_call.1} parent=1 // pred_region
      _
    $region21: #{tpu_custom_call.1} parent=1 // pred_fallthru
      _
    // Predicated region
    $region22: #{tpu_custom_call.1} parent=1 // pred_check
      _
    $region23: #{tpu_custom_call.1} parent=1 // pred_check_branch
      %67 = sbr.rel (0) target = $region25
    $region24: #{tpu_custom_call.1} parent=1 // pred_region
      %69 = vsyncadd [#allocation9], 0
      %s70 = sshll.u32 %s5, 4
      %s71 = int_to_ptr.hbm [resolvable:$true] %s70
      %s72 = sshll.u32 [#allocation10], 4
      %s73 = int_to_ptr.vmem [resolvable:$true] %s72
      %78 = dma.hbm_to_vmem [thread:$0]  %s71, 1024, %s73, [#allocation9], 64, 64, 4
    $region25: #{tpu_custom_call.1} parent=1 // pred_fallthru
      _
    // Predicated region
    $region26: #{tpu_custom_call.1} parent=1 // pred_check
      _
    $region27: #{tpu_custom_call.1} parent=1 // pred_check_branch
      %80 = sbr.rel (0) target = $region29
    $region28: #{tpu_custom_call.1} parent=1 // pred_region
      _
    $region29: #{tpu_custom_call.1} parent=1 // pred_fallthru
      _
    // Predicated region
    $region30: #{tpu_custom_call.1} parent=1 // pred_check
      _
    $region31: #{tpu_custom_call.1} parent=1 // pred_check_branch
      %82 = sbr.rel (0) target = $region33
    $region32: #{tpu_custom_call.1} parent=1 // pred_region
      %84 = dma.done [#allocation3], 128
    $region33: #{tpu_custom_call.1} parent=1 // pred_fallthru
      _
    // Predicated region
    $region34: #{tpu_custom_call.1} parent=1 // pred_check
      _
    $region35: #{tpu_custom_call.1} parent=1 // pred_check_branch
      %86 = sbr.rel (0) target = $region37
    $region36: #{tpu_custom_call.1} parent=1 // pred_region
      %88 = dma.done [#allocation6], 128
    $region37: #{tpu_custom_call.1} parent=1 // pred_fallthru
      _
    // Predicated region
    $region38: #{tpu_custom_call.1} parent=1 // pred_check
      _
    $region39: #{tpu_custom_call.1} parent=1 // pred_check_branch
      %90 = sbr.rel (0) target = $region41
    $region40: #{tpu_custom_call.1} parent=1 // pred_region
      %92 = dma.done [#allocation6], 1024
    $region41: #{tpu_custom_call.1} parent=1 // pred_fallthru
      _
    // Predicated region
    $region42: #{tpu_custom_call.1} parent=1 // pred_check
      _
    $region43: #{tpu_custom_call.1} parent=1 // pred_check_branch
      %94 = sbr.rel (0) target = $region45
    $region44: #{tpu_custom_call.1} parent=1 // pred_region
      %96 = dma.done [#allocation9], 1024
    $region45: #{tpu_custom_call.1} parent=1 // pred_fallthru
      _
    // Predicated region
    $region46: #{tpu_custom_call.1} parent=1 // pred_check
      _
    $region47: #{tpu_custom_call.1} parent=1 // pred_check_branch
      %98 = sbr.rel (0) target = $region49
    $region48: #{tpu_custom_call.1} parent=1 // pred_region
      %100 = dma.done [#allocation9], 1024
    $region49: #{tpu_custom_call.1} parent=1 // pred_fallthru
      _
    %v101 = vld [vmem:[#allocation2] sm:$0xff]
    %v102 = vpack.c.bf16 %v101, %v101
    %v103 = vld [vmem:[#allocation7] sm:$0xf]
    %v104 = vld [vmem:[#allocation7 + $0x4] sm:$0xf]
    %v105 = vld [vmem:[#allocation7 + $0x8] sm:$0xf]
    %v106 = vld [vmem:[#allocation7 + $0xc] sm:$0xf]
    %v107 = vld [vmem:[#allocation7 + $0x10] sm:$0xf]
    %v108 = vld [vmem:[#allocation7 + $0x14] sm:$0xf]
    %v109 = vld [vmem:[#allocation7 + $0x18] sm:$0xf]
    %v110 = vld [vmem:[#allocation7 + $0x1c] sm:$0xf]
    %v111 = vld [vmem:[#allocation7 + $0x20] sm:$0xf]
    %v112 = vld [vmem:[#allocation7 + $0x24] sm:$0xf]
    %v113 = vld [vmem:[#allocation7 + $0x28] sm:$0xf]
    %v114 = vld [vmem:[#allocation7 + $0x2c] sm:$0xf]
    %v115 = vld [vmem:[#allocation7 + $0x30] sm:$0xf]
    %v116 = vld [vmem:[#allocation7 + $0x34] sm:$0xf]
    %v117 = vld [vmem:[#allocation7 + $0x38] sm:$0xf]
    %v118 = vld [vmem:[#allocation7 + $0x3c] sm:$0xf]
    %v119 = vld [vmem:[#allocation5] sm:$0xff]
    %v120 = vpack.c.bf16 %v119, %v119
    %v121 = vld [vmem:[#allocation8] sm:$0xf]
    %v122 = vld [vmem:[#allocation8 + $0x4] sm:$0xf]
    %v123 = vld [vmem:[#allocation8 + $0x8] sm:$0xf]
    %v124 = vld [vmem:[#allocation8 + $0xc] sm:$0xf]
    %v125 = vld [vmem:[#allocation8 + $0x10] sm:$0xf]
    %v126 = vld [vmem:[#allocation8 + $0x14] sm:$0xf]
    %v127 = vld [vmem:[#allocation8 + $0x18] sm:$0xf]
    %v128 = vld [vmem:[#allocation8 + $0x1c] sm:$0xf]
    %v129 = vld [vmem:[#allocation8 + $0x20] sm:$0xf]
    %v130 = vld [vmem:[#allocation8 + $0x24] sm:$0xf]
    %v131 = vld [vmem:[#allocation8 + $0x28] sm:$0xf]
    %v132 = vld [vmem:[#allocation8 + $0x2c] sm:$0xf]
    %v133 = vld [vmem:[#allocation8 + $0x30] sm:$0xf]
    %v134 = vld [vmem:[#allocation8 + $0x34] sm:$0xf]
    %v135 = vld [vmem:[#allocation8 + $0x38] sm:$0xf]
    %v136 = vld [vmem:[#allocation8 + $0x3c] sm:$0xf]
    %v153 = vunpack.c.l.b16 %v121
    %v154 = vunpack.c.l.b16 %v122
    %v155 = vunpack.c.l.b16 %v123
    %v156 = vunpack.c.l.b16 %v124
    %v157 = vunpack.c.l.b16 %v125
    %v158 = vunpack.c.l.b16 %v126
    %v159 = vunpack.c.l.b16 %v127
    %v160 = vunpack.c.l.b16 %v128
    %v161 = vunpack.c.l.b16 %v129
    %v162 = vunpack.c.l.b16 %v130
    %v163 = vunpack.c.l.b16 %v131
    %v164 = vunpack.c.l.b16 %v132
    %v165 = vunpack.c.l.b16 %v133
    %v166 = vunpack.c.l.b16 %v134
    %v167 = vunpack.c.l.b16 %v135
    %v168 = vunpack.c.l.b16 %v136
    %v169 = vpack.c.b16 %v154, %v153
    %v170 = vpack.c.b16 %v156, %v155
    %v171 = vpack.c.b16 %v158, %v157
    %v172 = vpack.c.b16 %v160, %v159
    %v173 = vpack.c.b16 %v162, %v161
    %v174 = vpack.c.b16 %v164, %v163
    %v175 = vpack.c.b16 %v166, %v165
    %v176 = vpack.c.b16 %v168, %v167
    %185 = vmatpush.bf16.msra.mxu0 %v176
    %186 = vmatpush.bf16.msra.mxu0 %v175
    %187 = vmatpush.bf16.msra.mxu0 %v174
    %188 = vmatpush.bf16.msra.mxu0 %v173
    %189 = vmatpush.bf16.msra.mxu0 %v172
    %190 = vmatpush.bf16.msra.mxu0 %v171
    %191 = vmatpush.bf16.msra.mxu0 %v170
    %192 = vmatpush.bf16.msra.mxu0 %v169
    %193 = vmatmul.bf16.gmra.mxu0 %v120
    %v194 = vpop.f32.mrf.mxu0
    %v195 = vadd.f32 0.0, %v194
    %v196 = vpop.f32.mrf.mxu0
    %197 = vdwg.mxu0
    %v214 = vunpack.c.l.b16 %v103
    %v215 = vunpack.c.l.b16 %v104
    %v216 = vunpack.c.l.b16 %v105
    %v217 = vunpack.c.l.b16 %v106
    %v218 = vunpack.c.l.b16 %v107
    %v219 = vunpack.c.l.b16 %v108
    %v220 = vunpack.c.l.b16 %v109
    %v221 = vunpack.c.l.b16 %v110
    %v222 = vunpack.c.l.b16 %v111
    %v223 = vunpack.c.l.b16 %v112
    %v224 = vunpack.c.l.b16 %v113
    %v225 = vunpack.c.l.b16 %v114
    %v226 = vunpack.c.l.b16 %v115
    %v227 = vunpack.c.l.b16 %v116
    %v228 = vunpack.c.l.b16 %v117
    %v229 = vunpack.c.l.b16 %v118
    %v230 = vpack.c.b16 %v215, %v214
    %v231 = vpack.c.b16 %v217, %v216
    %v232 = vpack.c.b16 %v219, %v218
    %v233 = vpack.c.b16 %v221, %v220
    %v234 = vpack.c.b16 %v223, %v222
    %v235 = vpack.c.b16 %v225, %v224
    %v236 = vpack.c.b16 %v227, %v226
    %v237 = vpack.c.b16 %v229, %v228
    %246 = vmatpush.bf16.msra.mxu0 %v237
    %247 = vmatpush.bf16.msra.mxu0 %v236
    %248 = vmatpush.bf16.msra.mxu0 %v235
    %249 = vmatpush.bf16.msra.mxu0 %v234
    %250 = vmatpush.bf16.msra.mxu0 %v233
    %251 = vmatpush.bf16.msra.mxu0 %v232
    %252 = vmatpush.bf16.msra.mxu0 %v231
    %253 = vmatpush.bf16.msra.mxu0 %v230
    %254 = vmatmul.bf16.gmra.mxu0 %v102
    %v255 = vpop.f32.mrf.mxu0
    %v256 = vadd.f32 %v195, %v255
    %v257 = vpop.f32.mrf.mxu0
    %258 = vdwg.mxu0
    %v259 = vld [vmem:[%s4] sm:$0x1]
    %v261 = vperm.slane %v259, 0
    %v263 = vadd.f32 %v256, %v261
    %v264 = vtanh.pop %v263
    %v265 = vpack.c.bf16 %v264, %v264
    %v266 = vld [vmem:[#allocation10] sm:$0xf]
    %v267 = vld [vmem:[#allocation10 + $0x4] sm:$0xf]
    %v268 = vld [vmem:[#allocation10 + $0x8] sm:$0xf]
    %v269 = vld [vmem:[#allocation10 + $0xc] sm:$0xf]
    %v270 = vld [vmem:[#allocation10 + $0x10] sm:$0xf]
    %v271 = vld [vmem:[#allocation10 + $0x14] sm:$0xf]
    %v272 = vld [vmem:[#allocation10 + $0x18] sm:$0xf]
    %v273 = vld [vmem:[#allocation10 + $0x1c] sm:$0xf]
    %v274 = vld [vmem:[#allocation10 + $0x20] sm:$0xf]
    %v275 = vld [vmem:[#allocation10 + $0x24] sm:$0xf]
    %v276 = vld [vmem:[#allocation10 + $0x28] sm:$0xf]
    %v277 = vld [vmem:[#allocation10 + $0x2c] sm:$0xf]
    %v278 = vld [vmem:[#allocation10 + $0x30] sm:$0xf]
    %v279 = vld [vmem:[#allocation10 + $0x34] sm:$0xf]
    %v280 = vld [vmem:[#allocation10 + $0x38] sm:$0xf]
    %v281 = vld [vmem:[#allocation10 + $0x3c] sm:$0xf]
    %v282 = vld [vmem:[%s6] sm:$0x1]
    %v284 = vperm.slane %v282, 0
    %v302 = vunpack.c.l.b16 %v266
    %v303 = vunpack.c.l.b16 %v267
    %v304 = vunpack.c.l.b16 %v268
    %v305 = vunpack.c.l.b16 %v269
    %v306 = vunpack.c.l.b16 %v270
    %v307 = vunpack.c.l.b16 %v271
    %v308 = vunpack.c.l.b16 %v272
    %v309 = vunpack.c.l.b16 %v273
    %v310 = vunpack.c.l.b16 %v274
    %v311 = vunpack.c.l.b16 %v275
    %v312 = vunpack.c.l.b16 %v276
    %v313 = vunpack.c.l.b16 %v277
    %v314 = vunpack.c.l.b16 %v278
    %v315 = vunpack.c.l.b16 %v279
    %v316 = vunpack.c.l.b16 %v280
    %v317 = vunpack.c.l.b16 %v281
    %v318 = vpack.c.b16 %v303, %v302
    %v319 = vpack.c.b16 %v305, %v304
    %v320 = vpack.c.b16 %v307, %v306
    %v321 = vpack.c.b16 %v309, %v308
    %v322 = vpack.c.b16 %v311, %v310
    %v323 = vpack.c.b16 %v313, %v312
    %v324 = vpack.c.b16 %v315, %v314
    %v325 = vpack.c.b16 %v317, %v316
    %334 = vmatpush.bf16.msra.mxu0 %v325
    %335 = vmatpush.bf16.msra.mxu0 %v324
    %336 = vmatpush.bf16.msra.mxu0 %v323
    %337 = vmatpush.bf16.msra.mxu0 %v322
    %338 = vmatpush.bf16.msra.mxu0 %v321
    %339 = vmatpush.bf16.msra.mxu0 %v320
    %340 = vmatpush.bf16.msra.mxu0 %v319
    %341 = vmatpush.bf16.msra.mxu0 %v318
    %342 = vmatmul.bf16.gmra.mxu0 %v265
    %v343 = vpop.f32.mrf.mxu0
    %v344 = vadd.f32 %v284, %v343
    %v345 = vpop.f32.mrf.mxu0
    %346 = vdwg.mxu0
    %347 = vst [vmem:[#allocation11] sm:$0xff] %v344
    // Predicated region
    $region50: #{tpu_custom_call.1} parent=1 // pred_check
      _
    $region51: #{tpu_custom_call.1} parent=1 // pred_check_branch
      %349 = sbr.rel (0) target = $region53
    $region52: #{tpu_custom_call.1} parent=1 // pred_region
      %351 = vsyncadd [#allocation4], 0
      %s353 = sshll.u32 [#allocation11], 4
      %s354 = int_to_ptr.vmem [resolvable:$true] %s353
      %s355 = sshll.u32 %s7, 4
      %s356 = int_to_ptr.hbm [resolvable:$true] %s355
      %358 = dma.vmem_to_hbm [thread:$0]  %s354, 128, %s356, [#allocation4]
    $region53: #{tpu_custom_call.1} parent=1 // pred_fallthru
      _
    // Predicated region
    $region54: #{tpu_custom_call.1} parent=1 // pred_check
      _
    $region55: #{tpu_custom_call.1} parent=1 // pred_check_branch
      %360 = sbr.rel (0) target = $region57
    $region56: #{tpu_custom_call.1} parent=1 // pred_region
      %362 = dma.done [#allocation4], 128
    $region57: #{tpu_custom_call.1} parent=1 // pred_fallthru
      _
    %363 = vsyncpa [#allocation3], 1
    %364 = vsyncpa [#allocation6], 1
    %365 = vsyncpa [#allocation9], 1
    %366 = vsyncpa [#allocation4], 1

</llo_original>
